<compile_context>
chip_gen: v6e
topology: v6e:2x2x1
jax: 0.10.0
libtpu: 0.0.40
codegen_flags: <defaults>
</compile_context>

<pallas_src>
import functools

import jax
import jax.numpy as jnp
from jax.experimental import pallas as pl
from jax.experimental.pallas import tpu as pltpu

# DistillationType enum values (mirrors the PyTorch enum)
MSE = 0
KL_DIVERGENCE = 1
CROSS_ENTROPY = 2


def _vmem_budgets():
    """Generation-aware (input_budget_bytes, vmem_limit_bytes, assume_megacore)."""
    try:
        cap = int(pltpu.get_tpu_info().vmem_capacity_bytes)
    except Exception:
        cap = 64 * 1024 * 1024  # conservative: assume the smaller (v7x-like) VMEM
    if cap >= 96 * 1024 * 1024:
        # v5e / v6e: 128 MiB physical VMEM, single TensorCore per chip.
        return 56 * 1024 * 1024, 88 * 1024 * 1024, False
    # v7x-like: 64 MiB per TensorCore, 2 TCs per chip (megacore) -> smaller tiles,
    # but make sure there are >=2 grid steps so the "parallel" axis shards across TCs.
    return 18 * 1024 * 1024, 36 * 1024 * 1024, True


def _round_up8(x):
    return ((x + 7) // 8) * 8


def _pick_block_rows(batch, classes, stream_itemsize, has_hard, budget_bytes):
    """Largest row-tile whose double-buffered inputs + f32 working set fit the budget."""
    # Double-buffered student + teacher tiles at the streamed dtype.
    dma_per_row = 2 * 2 * classes * stream_itemsize
    # In-kernel f32 working set: upcast s, upcast t, exp tile, product temporary (~4 live tiles).
    work_per_row = 4 * classes * 4
    # (TB, 1) int32 target, double-buffered: noise, charged at its true cost.
    tgt_per_row = (2 * 4) if has_hard else 0
    per_row = dma_per_row + work_per_row + tgt_per_row
    rows = budget_bytes // max(per_row, 1)
    if rows >= batch:
        return batch                      # single block == full array (always legal)
    rows = max(8, (rows // 8) * 8)        # sublane-aligned
    return min(rows, batch)


def _int_pow(x, n):
    """x ** n for a small static positive int n, via VPU multiplies (exp-by-squaring)."""
    result = None
    base = x
    while n:
        if n & 1:
            result = base if result is None else result * base
        n >>= 1
        if n:
            base = base * base
    return result


def _distill_kernel(*refs, coef_soft, coef_hard, inv_temp, loss_type,
                    has_hard, label_smoothing, batch, block_rows, needs_mask,
                    hard_exp_pow):
    """One (TB, C) tile -> one lane-dense partial-loss block.

    refs = (s_ref, t_ref[, tgt_ref], out_ref)
      s_ref, t_ref : (TB, C) student / teacher logits
      tgt_ref      : (TB, 1) int32 class targets (only when has_hard)
      out_ref      : (1, 8, 128) partial loss, broadcast-filled (wrapper reads [., 0, 0])
    """
    if has_hard:
        s_ref, t_ref, tgt_ref, out_ref = refs
    else:
        s_ref, t_ref, out_ref = refs

    s = s_ref[...].astype(jnp.float32)
    t = t_ref[...].astype(jnp.float32)
    tb, num_classes = s.shape

    # Row-validity mask for the (statically known) padded last tile.
    if needs_mask:
        row_ids = (pl.program_id(0) * block_rows
                   + jax.lax.broadcasted_iota(jnp.int32, (tb, 1), 0))
        valid = row_ids < batch
    else:
        valid = None

    def masked_rowsum(rows):  # rows: (TB, 1) per-row losses
        if valid is not None:
            rows = jnp.where(valid, rows, 0.0)  # select: garbage/NaN rows dropped
        return jnp.sum(rows)

    partial = jnp.float32(0.0)
    e1 = None          # exp(s/T - max(s)/T), reused for the hard-path lse when T is integer
    s_lse_t = None

    # ---------------- teacher (soft-target) loss ----------------
    if loss_type == MSE:
        d = s - t
        rows = jnp.sum(d * d, axis=-1, keepdims=True)            # (TB,1)
        partial = partial + coef_soft * masked_rowsum(rows)
        if has_hard:
            m = jnp.max(s, axis=-1, keepdims=True)                # for hard-path lse
    else:
        # shared student row max: max(s / T) == max(s) / T for T > 0
        m = jnp.max(s, axis=-1, keepdims=True)
        s_t = s * inv_temp
        s_maxt = m * inv_temp
        e1 = jnp.exp(s_t - s_maxt)
        s_sumt = jnp.sum(e1, axis=-1, keepdims=True)
        s_lse_t = jnp.log(s_sumt) + s_maxt                        # (TB,1)

        t_t = t * inv_temp
        t_max = jnp.max(t_t, axis=-1, keepdims=True)
        t_shift = t_t - t_max
        t_e = jnp.exp(t_shift)
        t_sum = jnp.sum(t_e, axis=-1, keepdims=True)
        # Per-row (TB,1) reciprocal folded OUTSIDE the lane sum: no full-width broadcast
        # multiply by t_prob.  approx=False kept: the operand is only TB values.
        inv_t_sum = pl.reciprocal(t_sum, approx=False)
        log_t_sum = jnp.log(t_sum)

        if loss_type == KL_DIVERGENCE:
            # sum_j p_t (log p_t - log p_s) = (1/t_sum) sum_j t_e (t_shift - s_t)
            #                                  + s_lse_t - log t_sum
            cross = jnp.sum(t_e * (t_shift - s_t), axis=-1, keepdims=True)
            rows = cross * inv_t_sum + s_lse_t - log_t_sum
        else:  # CROSS_ENTROPY
            # -sum_j p_t log p_s = s_lse_t - (1/t_sum) sum_j t_e * s_t
            cross = jnp.sum(t_e * s_t, axis=-1, keepdims=True)
            rows = s_lse_t - cross * inv_t_sum
        partial = partial + coef_soft * masked_rowsum(rows)

    # ---------------- hard-target (label-smoothed CE) loss ----------------
    if has_hard:
        tgt = tgt_ref[...]                                        # (TB,1) int32
        cols = jax.lax.broadcasted_iota(jnp.int32, (tb, num_classes), 1)

        if loss_type != MSE and inv_temp == 1.0:
            lse = s_lse_t                     # temperature == 1: identical log-sum-exp
        elif loss_type != MSE and hard_exp_pow is not None:
            # exp(s - m) == (exp(s/T - m/T)) ** T for integer T: VPU multiplies, no 3rd exp.
            e_full = _int_pow(e1, hard_exp_pow)
            lse = jnp.log(jnp.sum(e_full, axis=-1, keepdims=True)) + m
        else:
            lse = jnp.log(jnp.sum(jnp.exp(s - m), axis=-1, keepdims=True)) + m

        eps = label_smoothing
        w_on = 1.0 - eps + eps / num_classes                      # weight on the target class
        w_off = eps / num_classes                                 # weight on all other classes
        # -sum_j [(1-eps)*onehot + eps/C] * logp_j  ==  lse - sum_j w_j * s_j
        # Single fused lane reduction (1 XLU reduce + 1 VPU mul instead of 2 reduces).
        weighted = jnp.where(cols == tgt, s * w_on, s * w_off)
        rows = lse - jnp.sum(weighted, axis=-1, keepdims=True)
        partial = partial + coef_hard * masked_rowsum(rows)

    # Lane-dense unmasked store of the per-tile partial; wrapper reads [., 0, 0].
    out_ref[...] = jnp.full(out_ref.shape, partial, dtype=jnp.float32)


def distillation_loss(student_logits, teacher_logits, target=None, *,
                      soft_target_alpha, temperature=1.0,
                      loss_type=KL_DIVERGENCE, label_smoothing=0.1,
                      block_rows=None, stream_dtype=None):
    """JAX wrapper reproducing DistillationCriterion.forward.

    stream_dtype: optionally cast the logits (e.g. to jnp.bfloat16) before the pallas_call
    to halve the streamed HBM bytes on HBM-bound parts (v5e/v6e); in-kernel math stays f32.
    """
    if stream_dtype is not None:
        student_logits = student_logits.astype(stream_dtype)
        teacher_logits = teacher_logits.astype(stream_dtype)

    B, C = student_logits.shape
    soft_alpha = float(soft_target_alpha)
    hard_alpha = 1.0 - soft_alpha
    has_hard = hard_alpha > 0.0
    if has_hard and target is None:
        raise ValueError("target is required when hard_target_alpha > 0")

    itemsize = jnp.dtype(student_logits.dtype).itemsize
    input_budget, vmem_limit, assume_megacore = _vmem_budgets()

    if block_rows is None:
        block_rows = _pick_block_rows(B, C, itemsize, has_hard, input_budget)
        if assume_megacore:
            # Guarantee >=2 grid steps (and prefer an even count) so the "parallel" grid
            # axis actually shards across the 2 TensorCores.
            if block_rows >= B and B > 8:
                block_rows = max(8, _round_up8(-(-B // 2)))
            nb_try = -(-B // block_rows)
            if nb_try > 1 and nb_try % 2 == 1:
                cand = max(8, _round_up8(-(-B // (nb_try + 1))))
                if (-(-B // cand)) % 2 == 0:
                    block_rows = cand
    block_rows = int(min(block_rows, B))
    nb = (B + block_rows - 1) // block_rows
    needs_mask = (B % block_rows) != 0

    # forward(): when hard_alpha == 0 the teacher loss is returned UNWEIGHTED.
    soft_weight = soft_alpha if has_hard else 1.0
    if loss_type == MSE:
        coef_soft = soft_weight / (B * C)
    else:
        coef_soft = soft_weight * (float(temperature) ** 2) / B
    coef_hard = (hard_alpha / B) if has_hard else 0.0

    # Reuse exp(s/T - m/T)**T for the hard-path lse when T is a small integer != 1.
    t_f = float(temperature)
    t_int = int(round(t_f))
    hard_exp_pow = None
    if (has_hard and loss_type != MSE and abs(t_f - t_int) < 1e-9
            and 2 <= t_int <= 8):
        hard_exp_pow = t_int

    kernel = functools.partial(
        _distill_kernel,
        coef_soft=float(coef_soft),
        coef_hard=float(coef_hard),
        inv_temp=float(1.0 / t_f),
        loss_type=int(loss_type),
        has_hard=has_hard,
        label_smoothing=float(label_smoothing),
        batch=int(B),
        block_rows=block_rows,
        needs_mask=needs_mask,
        hard_exp_pow=hard_exp_pow,
    )

    in_specs = [
        pl.BlockSpec((block_rows, C), lambda i: (i, 0)),
        pl.BlockSpec((block_rows, C), lambda i: (i, 0)),
    ]
    inputs = [student_logits, teacher_logits]
    if has_hard:
        # Tiny (B,1) int32 instead of a (B,C) f32 smoothed one-hot.
        in_specs.append(pl.BlockSpec((block_rows, 1), lambda i: (i, 0)))
        inputs.append(target.astype(jnp.int32).reshape(B, 1))

    # Advisory cost estimate for XLA scheduling around the custom call.
    if loss_type == MSE:
        transc = 0
        flops = 3 * B * C
    else:
        transc = 2 * B * C
        flops = 8 * B * C
    if has_hard:
        flops += 5 * B * C
        if (loss_type == MSE) or (t_f != 1.0 and hard_exp_pow is None):
            transc += B * C
    bytes_accessed = 2 * B * C * itemsize + (B * 4 if has_hard else 0) + nb * 8 * 128 * 4

    partials = pl.pallas_call(
        kernel,
        out_shape=jax.ShapeDtypeStruct((nb, 8, 128), jnp.float32),
        grid=(nb,),
        in_specs=in_specs,
        out_specs=pl.BlockSpec((1, 8, 128), lambda i: (i, 0, 0)),
        compiler_params=pltpu.CompilerParams(
            dimension_semantics=("parallel",),     # independent tiles -> megacore on 2-TC parts
            vmem_limit_bytes=int(vmem_limit),
        ),
        cost_estimate=pl.CostEstimate(
            flops=int(flops),
            transcendentals=int(transc),
            bytes_accessed=int(bytes_accessed),
        ),
    )(*inputs)

    # Sum the per-tile partials (nb scalars) in plain JAX.
    return jnp.sum(partials[:, 0, 0])


def _reference(student, teacher, target, *, soft_alpha, temperature,
               loss_type, label_smoothing):
    """Pure-JAX reference for sanity checking."""
    B, C = student.shape
    hard_alpha = 1.0 - soft_alpha
    if loss_type == MSE:
        teacher_loss = jnp.mean((student - teacher) ** 2)
    else:
        s_lp = jax.nn.log_softmax(student / temperature, axis=-1)
        t_p = jax.nn.softmax(teacher / temperature, axis=-1)
        if loss_type == KL_DIVERGENCE:
            t_lp = jax.nn.log_softmax(teacher / temperature, axis=-1)
            teacher_loss = jnp.sum(t_p * (t_lp - s_lp)) / B * temperature ** 2
        else:
            teacher_loss = -jnp.mean(jnp.sum(t_p * s_lp, axis=-1)) * temperature ** 2
    if hard_alpha > 0.0:
        # TODO(synk): SmoothCrossEntropy source not provided; standard label smoothing assumed.
        onehot = jax.nn.one_hot(target, C, dtype=jnp.float32)
        tgt = onehot * (1.0 - label_smoothing) + label_smoothing / C
        logp = jax.nn.log_softmax(student, axis=-1)
        target_loss = -jnp.mean(jnp.sum(tgt * logp, axis=-1))
        return hard_alpha * target_loss + soft_alpha * teacher_loss
    return teacher_loss


if __name__ == "__main__":
    key = jax.random.PRNGKey(0)

    # (B, C, loss_type, soft_alpha, temperature, smoothing, forced block_rows, bf16 stream)
    configs = [
        (8, 128, KL_DIVERGENCE, 0.7, 2.0, 0.1, None, False),   # hard+soft, int T -> e1**T reuse
        (20, 256, CROSS_ENTROPY, 0.4, 1.5, 0.1, 8, False),     # tiled + padded last tile (mask)
        (16, 128, MSE, 1.0, 1.0, 0.1, 8, False),               # pure soft: no target DMA
        (16, 128, KL_DIVERGENCE, 1.0, 3.0, 0.1, None, False),  # pure soft KL, T != 1
        (24, 384, KL_DIVERGENCE, 0.6, 2.0, 0.1, None, True),   # bf16 streaming path
        (12, 128, CROSS_ENTROPY, 0.5, 1.0, 0.1, None, False),  # hard+soft, T == 1 (lse reuse)
    ]

    for idx, (B, C, lt, sa, temp, eps, br, use_bf16) in enumerate(configs):
        k1, k2, k3 = jax.random.split(jax.random.fold_in(key, idx), 3)
        student = jax.random.normal(k1, (B, C), dtype=jnp.float32)
        teacher = jax.random.normal(k2, (B, C), dtype=jnp.float32)
        target = jax.random.randint(k3, (B,), 0, C, dtype=jnp.int32)

        stream_dtype = jnp.bfloat16 if use_bf16 else None
        loss = distillation_loss(
            student, teacher, target,
            soft_target_alpha=sa, temperature=temp,
            loss_type=lt, label_smoothing=eps, block_rows=br,
            stream_dtype=stream_dtype,
        )
        loss = jax.block_until_ready(loss)

        if use_bf16:
            # Reference on the same bf16-rounded inputs (kernel math is f32 on those values).
            ref_s = student.astype(jnp.bfloat16).astype(jnp.float32)
            ref_t = teacher.astype(jnp.bfloat16).astype(jnp.float32)
        else:
            ref_s, ref_t = student, teacher
        ref = _reference(
            ref_s, ref_t, target,
            soft_alpha=sa, temperature=temp,
            loss_type=lt, label_smoothing=eps,
        )
        assert jnp.allclose(loss, ref, rtol=1e-4, atol=1e-5), (idx, loss, ref)

    print("KERNEL_OK")
</pallas_src>

<mosaic_0001>
module attributes {stable_mosaic.version = 11 : i64} {
  func.func @_distill_kernel(%arg0: i32, %arg1: memref<8x128xf32, #tpu.memory_space<vmem>>, %arg2: memref<8x128xf32, #tpu.memory_space<vmem>>, %arg3: memref<8x1xi32, #tpu.memory_space<vmem>>, %arg4: memref<1x8x128xf32, #tpu.memory_space<vmem>>) attributes {dimension_semantics = [#tpu.dimension_semantics<parallel>], iteration_bounds = array<i64: 1>, scalar_prefetch = 0 : i64, scratch_operands = 0 : i64, tpu.core_type = #tpu.core_type<tc>, window_params = [{transform_indices = @transform_0, window_bounds = array<i64: 8, 128>}, {transform_indices = @transform_1, window_bounds = array<i64: 8, 128>}, {transform_indices = @transform_2, window_bounds = array<i64: 8, 1>}, {transform_indices = @transform_3, window_bounds = array<i64: 1, 8, 128>}]} {
    %c0 = arith.constant 0 : index
    %c0_0 = arith.constant 0 : index
    %0 = vector.load %arg1[%c0, %c0_0] : memref<8x128xf32, #tpu.memory_space<vmem>>, vector<8x128xf32>
    %c0_1 = arith.constant 0 : index
    %c0_2 = arith.constant 0 : index
    %1 = vector.load %arg2[%c0_1, %c0_2] : memref<8x128xf32, #tpu.memory_space<vmem>>, vector<8x128xf32>
    %cst = arith.constant dense<0xFF800000> : vector<8xf32>
    %2 = vector.multi_reduction <maximumf>, %0, %cst [1] : vector<8x128xf32> to vector<8xf32>
    %3 = vector.shape_cast %2 : vector<8xf32> to vector<8x1xf32>
    %cst_3 = arith.constant 5.000000e-01 : f32
    %4 = vector.broadcast %cst_3 : f32 to vector<8x128xf32>
    %5 = arith.mulf %0, %4 : vector<8x128xf32>
    %cst_4 = arith.constant 5.000000e-01 : f32
    %6 = vector.broadcast %cst_4 : f32 to vector<8x1xf32>
    %7 = arith.mulf %3, %6 : vector<8x1xf32>
    %8 = vector.broadcast %7 : vector<8x1xf32> to vector<8x128xf32>
    %9 = arith.subf %5, %8 : vector<8x128xf32>
    %10 = math.exp %9 : vector<8x128xf32>
    %cst_5 = arith.constant dense<0.000000e+00> : vector<8xf32>
    %11 = vector.multi_reduction <add>, %10, %cst_5 [1] : vector<8x128xf32> to vector<8xf32>
    %12 = vector.shape_cast %11 : vector<8xf32> to vector<8x1xf32>
    %13 = math.log %12 : vector<8x1xf32>
    %14 = arith.addf %13, %7 : vector<8x1xf32>
    %cst_6 = arith.constant 5.000000e-01 : f32
    %15 = vector.broadcast %cst_6 : f32 to vector<8x128xf32>
    %16 = arith.mulf %1, %15 : vector<8x128xf32>
    %cst_7 = arith.constant dense<0xFF800000> : vector<8xf32>
    %17 = vector.multi_reduction <maximumf>, %16, %cst_7 [1] : vector<8x128xf32> to vector<8xf32>
    %18 = vector.shape_cast %17 : vector<8xf32> to vector<8x1xf32>
    %19 = vector.broadcast %18 : vector<8x1xf32> to vector<8x128xf32>
    %20 = arith.subf %16, %19 : vector<8x128xf32>
    %21 = math.exp %20 : vector<8x128xf32>
    %cst_8 = arith.constant dense<0.000000e+00> : vector<8xf32>
    %22 = vector.multi_reduction <add>, %21, %cst_8 [1] : vector<8x128xf32> to vector<8xf32>
    %23 = vector.shape_cast %22 : vector<8xf32> to vector<8x1xf32>
    %24 = tpu.reciprocal %23 : vector<8x1xf32> -> vector<8x1xf32>
    %25 = math.log %23 : vector<8x1xf32>
    %26 = arith.subf %20, %5 : vector<8x128xf32>
    %27 = arith.mulf %21, %26 : vector<8x128xf32>
    %cst_9 = arith.constant dense<0.000000e+00> : vector<8xf32>
    %28 = vector.multi_reduction <add>, %27, %cst_9 [1] : vector<8x128xf32> to vector<8xf32>
    %29 = vector.shape_cast %28 : vector<8xf32> to vector<8x1xf32>
    %30 = arith.mulf %29, %24 : vector<8x1xf32>
    %31 = arith.addf %30, %14 : vector<8x1xf32>
    %32 = arith.subf %31, %25 : vector<8x1xf32>
    %33 = vector.shape_cast %32 : vector<8x1xf32> to vector<1x8x1xf32>
    %cst_10 = arith.constant dense<0.000000e+00> : vector<1xf32>
    %34 = vector.multi_reduction <add>, %33, %cst_10 [1, 2] : vector<1x8x1xf32> to vector<1xf32>
    %35 = vector.shape_cast %34 : vector<1xf32> to vector<1x1x1xf32>
    %36 = vector.extract %35[0, 0, 0] : f32 from vector<1x1x1xf32>
    %cst_11 = arith.constant 3.500000e-01 : f32
    %37 = arith.mulf %cst_11, %36 : f32
    %cst_12 = arith.constant 0.000000e+00 : f32
    %38 = arith.addf %cst_12, %37 : f32
    %c0_13 = arith.constant 0 : index
    %c0_14 = arith.constant 0 : index
    %39 = vector.load %arg3[%c0_13, %c0_14] : memref<8x1xi32, #tpu.memory_space<vmem>>, vector<8x1xi32>
    %40 = tpu.iota {dimensions = array<i32: 1>} : vector<8x128xi32>
    %41 = arith.mulf %10, %10 : vector<8x128xf32>
    %cst_15 = arith.constant dense<0.000000e+00> : vector<8xf32>
    %42 = vector.multi_reduction <add>, %41, %cst_15 [1] : vector<8x128xf32> to vector<8xf32>
    %43 = vector.shape_cast %42 : vector<8xf32> to vector<8x1xf32>
    %44 = math.log %43 : vector<8x1xf32>
    %45 = arith.addf %44, %3 : vector<8x1xf32>
    %46 = vector.broadcast %39 : vector<8x1xi32> to vector<8x128xi32>
    %47 = arith.cmpi eq, %40, %46 : vector<8x128xi32>
    %cst_16 = arith.constant 0.900781273 : f32
    %48 = vector.broadcast %cst_16 : f32 to vector<8x128xf32>
    %49 = arith.mulf %0, %48 : vector<8x128xf32>
    %cst_17 = arith.constant 7.812500e-04 : f32
    %50 = vector.broadcast %cst_17 : f32 to vector<8x128xf32>
    %51 = arith.mulf %0, %50 : vector<8x128xf32>
    %52 = arith.select %47, %49, %51 : vector<8x128xi1>, vector<8x128xf32>
    %cst_18 = arith.constant dense<0.000000e+00> : vector<8xf32>
    %53 = vector.multi_reduction <add>, %52, %cst_18 [1] : vector<8x128xf32> to vector<8xf32>
    %54 = vector.shape_cast %53 : vector<8xf32> to vector<8x1xf32>
    %55 = arith.subf %45, %54 : vector<8x1xf32>
    %56 = vector.shape_cast %55 : vector<8x1xf32> to vector<1x8x1xf32>
    %cst_19 = arith.constant dense<0.000000e+00> : vector<1xf32>
    %57 = vector.multi_reduction <add>, %56, %cst_19 [1, 2] : vector<1x8x1xf32> to vector<1xf32>
    %58 = vector.shape_cast %57 : vector<1xf32> to vector<1x1x1xf32>
    %59 = vector.extract %58[0, 0, 0] : f32 from vector<1x1x1xf32>
    %cst_20 = arith.constant 3.750000e-02 : f32
    %60 = arith.mulf %cst_20, %59 : f32
    %61 = arith.addf %38, %60 : f32
    %62 = vector.broadcast %61 : f32 to vector<1x8x128xf32>
    %c0_21 = arith.constant 0 : index
    %c0_22 = arith.constant 0 : index
    %c0_23 = arith.constant 0 : index
    %63 = vector.load %arg4[%c0_21, %c0_22, %c0_23] : memref<1x8x128xf32, #tpu.memory_space<vmem>>, vector<1x8x128xf32>
    tpu.vector_store %arg4[%c0_21, %c0_22, %c0_23], %62 {strides = array<i32>} : memref<1x8x128xf32, #tpu.memory_space<vmem>>, vector<1x8x128xf32>,
    return
  }
  func.func @transform_0(%arg0: i32) -> (i32, i32) {
    %c0_i32 = arith.constant 0 : i32
    %c0_i32_0 = arith.constant 0 : i32
    return %arg0, %c0_i32 : i32, i32
  }
  func.func @transform_1(%arg0: i32) -> (i32, i32) {
    %c0_i32 = arith.constant 0 : i32
    %c0_i32_0 = arith.constant 0 : i32
    return %arg0, %c0_i32 : i32, i32
  }
  func.func @transform_2(%arg0: i32) -> (i32, i32) {
    %c0_i32 = arith.constant 0 : i32
    %c0_i32_0 = arith.constant 0 : i32
    return %arg0, %c0_i32 : i32, i32
  }
  func.func @transform_3(%arg0: i32) -> (i32, i32, i32) {
    %c0_i32 = arith.constant 0 : i32
    %c0_i32_0 = arith.constant 0 : i32
    %c0_i32_1 = arith.constant 0 : i32
    return %arg0, %c0_i32, %c0_i32_0 : i32, i32, i32
  }
}

</mosaic_0001>

<llo_original>
// kernel: tpu_custom_call.1
$region0: #{tpu_custom_call.1}
  #allocation0 [shape = 'u32[]', space=smem, size = 0x4, offset = 0x4, fixed_abs, tag = 'smem constant byte address 0x4 - core index']
  #allocation1 [shape = 'u32[144,128]{1,0:T(1,128)}', space=vmem, size = 0x12000, scoped, tag = 'internal scratch']
  %s0 = inlined_call_operand.vmem [shape: f32[8,128], index: 0, kind: input, shape index: {}]
  %s1 = inlined_call_operand.hbm [shape: f32[8,128], index: 1, kind: input, shape index: {}]
  %s2 = inlined_call_operand.vmem [shape: s32[8,1], index: 2, kind: input, shape index: {}]
  %s3 = inlined_call_operand.hbm [shape: f32[1,8,128], index: 3, kind: output, shape index: {}]
  %s4 = sld [smem:[#allocation0]]
  $region26: #{tpu_custom_call.1} parent=0
    _
  %s6 = ssub.s32 1, %s4
  %s7 = scalar_select 0, %s6, %s4
  $region1: #{tpu_custom_call.1} parent=0
    #allocation2 [shape = 'u8[4096]{0}', space=vmem, size = 0x1000, scoped, tag = 'input window, operand 1, single buffered']
    #allocation3 [shape = 's32[1]{0}', space=sflag, size = 0x4, scoped, tag = 'scoped memory for tpu_custom_call.1']
    #allocation4 [shape = 's32[1]{0}', space=sflag, size = 0x4, scoped, tag = 'scoped memory for tpu_custom_call.1']
    #allocation5 [shape = 'u8[4096]{0}', space=vmem, size = 0x1000, scoped, tag = 'output window, operand 0, single buffered']
    %8 = vsyncpa [#allocation3], 0
    %9 = vsyncpa [#allocation4], 0
    // Predicated region
    $region2: #{tpu_custom_call.1} parent=1 // pred_check
      _
    $region3: #{tpu_custom_call.1} parent=1 // pred_check_branch
      %11 = sbr.rel (0) target = $region5
    $region4: #{tpu_custom_call.1} parent=1 // pred_region
      _
    $region5: #{tpu_custom_call.1} parent=1 // pred_fallthru
      _
    // Predicated region
    $region6: #{tpu_custom_call.1} parent=1 // pred_check
      _
    $region7: #{tpu_custom_call.1} parent=1 // pred_check_branch
      %13 = sbr.rel (0) target = $region9
    $region8: #{tpu_custom_call.1} parent=1 // pred_region
      %s15 = ssub.s32 128, 128
      %16 = vsyncadd [#allocation3], %s15
      %s18 = sshll.u32 [#allocation2], 4
      %s19 = int_to_ptr.vmem [resolvable:$true] %s18
      %21 = dma.hbm_to_vmem [thread:$0]  %s1, 128, %s19, [#allocation3]
    $region9: #{tpu_custom_call.1} parent=1 // pred_fallthru
      _
    // Predicated region
    $region10: #{tpu_custom_call.1} parent=1 // pred_check
      _
    $region11: #{tpu_custom_call.1} parent=1 // pred_check_branch
      %23 = sbr.rel (0) target = $region13
    $region12: #{tpu_custom_call.1} parent=1 // pred_region
      _
    $region13: #{tpu_custom_call.1} parent=1 // pred_fallthru
      _
    // Predicated region
    $region14: #{tpu_custom_call.1} parent=1 // pred_check
      _
    $region15: #{tpu_custom_call.1} parent=1 // pred_check_branch
      %25 = sbr.rel (0) target = $region17
    $region16: #{tpu_custom_call.1} parent=1 // pred_region
      %26 = dma.done [#allocation3], 128
    $region17: #{tpu_custom_call.1} parent=1 // pred_fallthru
      _
    %v27 = vld [vmem:[%s0] sm:$0xff]
    %v28 = vld [vmem:[#allocation2] sm:$0xff]
    %29 = vmax.xlane.f32.xlu0 %v27
    %v30 = vpop.xlane.xlu0 %29
    %v31 = vmul.f32 %v27, 0.5
    %v32 = vmul.f32 %v30, 0.5
    %v33 = vsub.f32 %v31, %v32
    %v34 = vmul.f32 %v33, 1.442695
    %v35 = vpow.pop %v34
    %36 = vadd.xlane.f32.xlu0 %v35
    %v37 = vpop.xlane.xlu0 %36
    %v38 = vlog2.pop %v37
    %v39 = vmul.f32 %v38, 0.6931472
    %v40 = vadd.f32 %v39, %v32
    %v41 = vmul.f32 %v28, 0.5
    %42 = vmax.xlane.f32.xlu0 %v41
    %v43 = vpop.xlane.xlu0 %42
    %v44 = vsub.f32 %v41, %v43
    %v45 = vmul.f32 %v44, 1.442695
    %v46 = vpow.pop %v45
    %47 = vadd.xlane.f32.xlu0 %v46
    %v48 = vpop.xlane.xlu0 %47
    %v49 = vrcp.pop %v48
    %v50 = vlog2.pop %v48
    %v51 = vmul.f32 %v50, 0.6931472
    %v52 = vsub.f32 %v44, %v31
    %v53 = vmul.f32 %v46, %v52
    %54 = vadd.xlane.f32.xlu0 %v53
    %v55 = vpop.xlane.xlu0 %54
    %v56 = vmul.f32 %v55, %v49
    %v57 = vadd.f32 %v56, %v40
    %v58 = vsub.f32 %v57, %v51
    %vm59 = vcmask 7168
    %v60 = vsel %vm59, %v58, 0.0
    %61 = vadd.xlane.f32.xlu0 %v60
    %v62 = vpop.xlane.xlu0 %61
    %v63 = vrot.slane %v62, 4
    %v64 = vadd.f32 %v62, %v63
    %v65 = vrot.slane %v64, 2
    %v66 = vadd.f32 %v64, %v65
    %v67 = vrot.slane %v66, 1
    %v68 = vadd.f32 %v66, %v67
    %s69 = vtos %v68
    %s70 = smul.f32 %s69, 0.35
    %s71 = sadd.f32 %s70, 0.0
    %v72 = vld [vmem:[%s2] sm:$0xff]
    %v73 = vlaneseq
    %v74 = vand.u32 %v73, 127
    %v75 = vmul.f32 %v35, %v35
    %76 = vadd.xlane.f32.xlu0 %v75
    %v77 = vpop.xlane.xlu0 %76
    %v78 = vlog2.pop %v77
    %v79 = vmul.f32 %v78, 0.6931472
    %v80 = vadd.f32 %v79, %v30
    %81 = vset.pattern.permute.xlu0 0
    %82 = vperm.xlu0 %81, %v72
    %v83 = vpop.permute.xlu0 %82
    %vm84 = vcmp.eq.s32.totalorder %v74, %v83
    %v85 = vmul.f32 %v27, 0.9007813
    %v86 = vmul.f32 %v27, 0.00078125
    %v87 = vsel %vm84, %v85, %v86
    %88 = vadd.xlane.f32.xlu0 %v87
    %v89 = vpop.xlane.xlu0 %88
    %v90 = vsub.f32 %v80, %v89
    %v91 = vsel %vm59, %v90, 0.0
    %92 = vadd.xlane.f32.xlu0 %v91
    %v93 = vpop.xlane.xlu0 %92
    %v94 = vrot.slane %v93, 4
    %v95 = vadd.f32 %v93, %v94
    %v96 = vrot.slane %v95, 2
    %v97 = vadd.f32 %v95, %v96
    %v98 = vrot.slane %v97, 1
    %v99 = vadd.f32 %v97, %v98
    %s100 = vtos %v99
    %s101 = smul.f32 %s100, 0.0375
    %s102 = sadd.f32 %s71, %s101
    %v103 = vstv %s102
    %104 = vst [vmem:[#allocation5] sm:$0xff] %v103
    // Predicated region
    $region18: #{tpu_custom_call.1} parent=1 // pred_check
      _
    $region19: #{tpu_custom_call.1} parent=1 // pred_check_branch
      %106 = sbr.rel (0) target = $region21
    $region20: #{tpu_custom_call.1} parent=1 // pred_region
      %s108 = ssub.s32 128, 128
      %109 = vsyncadd [#allocation4], %s108
      %s111 = sshll.u32 [#allocation5], 4
      %s112 = int_to_ptr.vmem [resolvable:$true] %s111
      %114 = dma.vmem_to_hbm [thread:$0]  %s112, 128, %s3, [#allocation4]
    $region21: #{tpu_custom_call.1} parent=1 // pred_fallthru
      _
    // Predicated region
    $region22: #{tpu_custom_call.1} parent=1 // pred_check
      _
    $region23: #{tpu_custom_call.1} parent=1 // pred_check_branch
      %116 = sbr.rel (0) target = $region25
    $region24: #{tpu_custom_call.1} parent=1 // pred_region
      %117 = dma.done [#allocation4], 128
    $region25: #{tpu_custom_call.1} parent=1 // pred_fallthru
      _
    %118 = vsyncpa [#allocation3], 1
    %119 = vsyncpa [#allocation4], 1

</llo_original>
